<compile_context>
chip_gen: v5e
topology: v5e:2x2
jax: 0.10.0
libtpu: 0.0.40
codegen_flags: <defaults>
</compile_context>

<pallas_src>
import jax
import jax.numpy as jnp
import numpy as np
from jax import lax
from jax.experimental import pallas as pl
from jax.experimental.pallas import tpu as pltpu


def local_histogram_layer3(x, conv_w, bin_centers, bin_widths, kernel_size, *, tile_p=None):
    """x: (N, Cin, H, W); conv_w: (Co*B, Cin, k, k) (PyTorch OIHW, bias=False).

    Returns (N, Co, 1, B) float32 matching the PyTorch module's forward.
    """
    N, Cin, H, W = x.shape
    B = int(bin_centers.shape[0])
    CoB = int(conv_w.shape[0])
    Co = CoB // B
    k = int(kernel_size)
    Ho, Wo = H - k + 1, W - k + 1
    P = Ho * Wo
    CKK = Cin * k * k

    # --- P tiling (lane axis); round to the 128-lane granule. ---
    if tile_p is None:
        # Biggest sensible default; on v7x (64 MiB VMEM) reduce this if CKK is large.
        tile_p = min(512, pl.cdiv(P, 128) * 128)
    TP = max(128, pl.cdiv(tile_p, 128) * 128)
    n_pt = pl.cdiv(P, TP)
    Ppad = n_pt * TP

    # --- glue: im2col directly in (N, CKK, P) layout (no transpose); row index is
    # cin*k*k + kh*k + kw, matching the OIHW weight flattening. ---
    # TODO(synk): for large inputs, stream x rows via memory_space=pl.ANY and do the
    # k^2 shifted-slice matmuls in-kernel to avoid the k^2-fold im2col HBM expansion.
    cols = []
    for kh in range(k):
        for kw in range(k):
            cols.append(x[:, :, kh:kh + Ho, kw:kw + Wo])          # (N, Cin, Ho, Wo)
    patches = jnp.stack(cols, axis=2).reshape(N, CKK, P).astype(jnp.float32)
    if Ppad != P:
        patches = jnp.pad(patches, ((0, 0), (0, 0), (0, Ppad - P)))

    w2 = conv_w.reshape(CoB, CKK).astype(jnp.float32)             # (CoB, CKK)
    # bin b pairs with conv output channel co*B + b (PyTorch broadcast semantics)
    centers = jnp.tile(bin_centers.astype(jnp.float32), Co).reshape(CoB, 1)
    inv = jnp.tile(1.0 / (2.0 * bin_widths.astype(jnp.float32) ** 2), Co).reshape(CoB, 1)
    gid = jnp.arange(CoB, dtype=jnp.int32) // B
    group_mat = (gid[:, None] == gid[None, :]).astype(jnp.float32)  # (CoB, CoB)

    needs_mask = (Ppad != P)

    def kernel(p_ref, w_ref, c_ref, inv_ref, gmat_ref, out_ref, acc_ref):
        pt = pl.program_id(1)

        @pl.when(pt == 0)
        def _():
            acc_ref[...] = jnp.zeros_like(acc_ref)

        # conv-as-matmul: (CoB, CKK) @ (CKK, TP) -> (CoB, TP), then ReLU
        y = jnp.dot(w_ref[...], p_ref[0], preferred_element_type=jnp.float32)
        y = jnp.maximum(y, 0.0)
        # Gaussian bin response: exp(-(y - c)^2 / (2 w^2)) with hoisted inv = 1/(2 w^2)
        d = y - c_ref[...]
        g = jnp.exp(-(d * d) * inv_ref[...])                      # (CoB, TP)
        if needs_mask:
            col = pt * TP + lax.broadcasted_iota(jnp.int32, (CoB, TP), 1)
            g = jnp.where(col < P, g, 0.0)
        acc_ref[...] += jnp.sum(g, axis=-1, keepdims=True)        # (CoB, 1)

        @pl.when(pt == pl.num_programs(1) - 1)
        def _():
            s = acc_ref[...]                                      # (CoB, 1)
            # per-(co) group totals over its B bins via tiny constant matmul
            tot = jnp.dot(gmat_ref[...], s, preferred_element_type=jnp.float32)
            out_ref[...] = (s / tot).reshape(out_ref.shape)       # (1, CoB, 1)

    out = pl.pallas_call(
        kernel,
        out_shape=jax.ShapeDtypeStruct((N, CoB, 1), jnp.float32),
        grid_spec=pltpu.PrefetchScalarGridSpec(
            num_scalar_prefetch=0,
            grid=(N, n_pt),
            in_specs=[
                pl.BlockSpec((1, CKK, TP), lambda n, p: (n, 0, p)),
                pl.BlockSpec((CoB, CKK), lambda n, p: (0, 0)),
                pl.BlockSpec((CoB, 1), lambda n, p: (0, 0)),
                pl.BlockSpec((CoB, 1), lambda n, p: (0, 0)),
                pl.BlockSpec((CoB, CoB), lambda n, p: (0, 0)),
            ],
            out_specs=pl.BlockSpec((1, CoB, 1), lambda n, p: (n, 0, 0)),
            scratch_shapes=[pltpu.VMEM((CoB, 1), jnp.float32)],
        ),
        compiler_params=pltpu.CompilerParams(
            dimension_semantics=("parallel", "arbitrary")),
    )(patches, w2, centers, inv, group_mat)

    return out.reshape(N, Co, B)[:, :, None, :]                   # (N, Co, 1, B)


def _reference(x, conv_w, bin_centers, bin_widths, kernel_size):
    """Pure-JAX reference mirroring the PyTorch forward (incl. its broadcast quirk)."""
    B = bin_centers.shape[0]
    Co = conv_w.shape[0] // B
    y = lax.conv_general_dilated(
        x, conv_w, window_strides=(1, 1), padding="VALID",
        dimension_numbers=("NCHW", "OIHW", "NCHW"))
    y = jnp.maximum(y, 0.0)
    N, _, Ho, Wo = y.shape
    y = y.reshape(N, Co, B, Ho, Wo)
    c = bin_centers.reshape(1, 1, B, 1, 1)
    w = bin_widths.reshape(1, 1, B, 1, 1)
    hist = jnp.exp(-((y - c) ** 2) / (2.0 * w ** 2))
    hist = hist.sum(-1).sum(-1)                 # (N, Co, B)
    hist = hist / hist.sum(-1, keepdims=True)
    return hist[:, :, None, :]                  # (N, Co, 1, B)


if __name__ == "__main__":
    key = jax.random.PRNGKey(0)
    # small shapes consistent with the module
    N, Cin, H, W = 2, 4, 16, 16
    Co, k = 2, 3
    bin_centers = jnp.array([0.0, 0.5, 1.0, 1.5], dtype=jnp.float32)
    bin_widths = jnp.array([0.25, 0.35, 0.45, 0.55], dtype=jnp.float32)
    B = bin_centers.shape[0]

    kx, kw = jax.random.split(key)
    x = jax.random.normal(kx, (N, Cin, H, W), dtype=jnp.float32)
    conv_w = jax.random.normal(kw, (Co * B, Cin, k, k), dtype=jnp.float32) * 0.1

    # tile_p=128 exercises the multi-tile P reduction path (P=196 -> 2 tiles + masking).
    out = local_histogram_layer3(x, conv_w, bin_centers, bin_widths, k, tile_p=128)
    out = jax.block_until_ready(out)

    ref = _reference(x, conv_w, bin_centers, bin_widths, k)
    assert out.shape == (N, Co, 1, B), out.shape
    np.testing.assert_allclose(np.asarray(out), np.asarray(ref), rtol=2e-5, atol=2e-5)
    print("KERNEL_OK")
</pallas_src>

<mosaic_0001>
module attributes {stable_mosaic.version = 11 : i64} {
  func.func @kernel(%arg0: i32, %arg1: i32, %arg2: memref<1x36x128xf32, #tpu.memory_space<vmem>>, %arg3: memref<8x36xf32, #tpu.memory_space<vmem>>, %arg4: memref<8x1xf32, #tpu.memory_space<vmem>>, %arg5: memref<8x1xf32, #tpu.memory_space<vmem>>, %arg6: memref<8x8xf32, #tpu.memory_space<vmem>>, %arg7: memref<1x8x1xf32, #tpu.memory_space<vmem>>, %arg8: memref<8x1xf32, #tpu.memory_space<vmem>>) attributes {dimension_semantics = [#tpu.dimension_semantics<parallel>, #tpu.dimension_semantics<arbitrary>], iteration_bounds = array<i64: 2, 2>, scalar_prefetch = 0 : i64, scratch_operands = 1 : i64, tpu.core_type = #tpu.core_type<tc>, window_params = [{transform_indices = @transform_0, window_bounds = array<i64: 1, 36, 128>}, {pipeline_mode = #tpu.pipeline_mode<synchronous>, transform_indices = @transform_1, window_bounds = array<i64: 8, 36>}, {pipeline_mode = #tpu.pipeline_mode<synchronous>, transform_indices = @transform_2, window_bounds = array<i64: 8, 1>}, {pipeline_mode = #tpu.pipeline_mode<synchronous>, transform_indices = @transform_3, window_bounds = array<i64: 8, 1>}, {pipeline_mode = #tpu.pipeline_mode<synchronous>, transform_indices = @transform_4, window_bounds = array<i64: 8, 8>}, {transform_indices = @transform_5, window_bounds = array<i64: 1, 8, 1>}]} {
    %c0_i32 = arith.constant 0 : i32
    %0 = arith.cmpi eq, %arg1, %c0_i32 : i32
    %1 = arith.extui %0 : i1 to i32
    %c0_i32_0 = arith.constant 0 : i32
    %2 = arith.cmpi ne, %1, %c0_i32_0 : i32
    scf.if %2 {
      %cst_18 = arith.constant 0.000000e+00 : f32
      %35 = vector.broadcast %cst_18 : f32 to vector<8x1xf32>
      %c0_19 = arith.constant 0 : index
      %c0_20 = arith.constant 0 : index
      %36 = vector.load %arg8[%c0_19, %c0_20] : memref<8x1xf32, #tpu.memory_space<vmem>>, vector<8x1xf32>
      tpu.vector_store %arg8[%c0_19, %c0_20], %35 {strides = array<i32>} : memref<8x1xf32, #tpu.memory_space<vmem>>, vector<8x1xf32>,
    } else {
    }
    %c0 = arith.constant 0 : index
    %c0_1 = arith.constant 0 : index
    %3 = vector.load %arg3[%c0, %c0_1] : memref<8x36xf32, #tpu.memory_space<vmem>>, vector<8x36xf32>
    %c0_2 = arith.constant 0 : index
    %c0_3 = arith.constant 0 : index
    %c0_4 = arith.constant 0 : index
    %4 = vector.load %arg2[%c0_2, %c0_3, %c0_4] : memref<1x36x128xf32, #tpu.memory_space<vmem>>, vector<1x36x128xf32>
    %5 = vector.shape_cast %4 : vector<1x36x128xf32> to vector<36x128xf32>
    %cst = arith.constant dense<0.000000e+00> : vector<8x128xf32>
    %6 = tpu.matmul %3, %5, %cst {dimension_numbers = #tpu.dot_dimension_numbers<[1], [0], [0], [1], [0, 0, 1, 1], [], []>} : vector<8x36xf32>, vector<36x128xf32>, vector<8x128xf32> -> vector<8x128xf32>
    %cst_5 = arith.constant 0.000000e+00 : f32
    %7 = vector.broadcast %cst_5 : f32 to vector<8x128xf32>
    %8 = arith.maximumf %6, %7 : vector<8x128xf32>
    %c0_6 = arith.constant 0 : index
    %c0_7 = arith.constant 0 : index
    %9 = vector.load %arg4[%c0_6, %c0_7] : memref<8x1xf32, #tpu.memory_space<vmem>>, vector<8x1xf32>
    %10 = vector.broadcast %9 : vector<8x1xf32> to vector<8x128xf32>
    %11 = arith.subf %8, %10 : vector<8x128xf32>
    %12 = arith.mulf %11, %11 : vector<8x128xf32>
    %cst_8 = arith.constant 0.000000e+00 : f32
    %13 = vector.broadcast %cst_8 : f32 to vector<8x128xf32>
    %14 = arith.subf %13, %12 : vector<8x128xf32>
    %c0_9 = arith.constant 0 : index
    %c0_10 = arith.constant 0 : index
    %15 = vector.load %arg5[%c0_9, %c0_10] : memref<8x1xf32, #tpu.memory_space<vmem>>, vector<8x1xf32>
    %16 = vector.broadcast %15 : vector<8x1xf32> to vector<8x128xf32>
    %17 = arith.mulf %14, %16 : vector<8x128xf32>
    %18 = math.exp %17 : vector<8x128xf32>
    %c128_i32 = arith.constant 128 : i32
    %19 = arith.muli %arg1, %c128_i32 : i32
    %20 = tpu.iota {dimensions = array<i32: 1>} : vector<8x128xi32>
    %21 = vector.broadcast %19 : i32 to vector<8x128xi32>
    %22 = arith.addi %21, %20 : vector<8x128xi32>
    %c196_i32 = arith.constant 196 : i32
    %23 = vector.broadcast %c196_i32 : i32 to vector<8x128xi32>
    %24 = arith.cmpi slt, %22, %23 : vector<8x128xi32>
    %cst_11 = arith.constant 0.000000e+00 : f32
    %25 = vector.broadcast %cst_11 : f32 to vector<8x128xf32>
    %26 = arith.select %24, %18, %25 : vector<8x128xi1>, vector<8x128xf32>
    %c0_12 = arith.constant 0 : index
    %c0_13 = arith.constant 0 : index
    %27 = vector.load %arg8[%c0_12, %c0_13] : memref<8x1xf32, #tpu.memory_space<vmem>>, vector<8x1xf32>
    %cst_14 = arith.constant dense<0.000000e+00> : vector<8xf32>
    %28 = vector.multi_reduction <add>, %26, %cst_14 [1] : vector<8x128xf32> to vector<8xf32>
    %29 = vector.shape_cast %28 : vector<8xf32> to vector<8x1xf32>
    %30 = arith.addf %27, %29 : vector<8x1xf32>
    %c0_15 = arith.constant 0 : index
    %c0_16 = arith.constant 0 : index
    %31 = vector.load %arg8[%c0_15, %c0_16] : memref<8x1xf32, #tpu.memory_space<vmem>>, vector<8x1xf32>
    tpu.vector_store %arg8[%c0_15, %c0_16], %30 {strides = array<i32>} : memref<8x1xf32, #tpu.memory_space<vmem>>, vector<8x1xf32>,
    %c1_i32 = arith.constant 1 : i32
    %32 = arith.cmpi eq, %arg1, %c1_i32 : i32
    %33 = arith.extui %32 : i1 to i32
    %c0_i32_17 = arith.constant 0 : i32
    %34 = arith.cmpi ne, %33, %c0_i32_17 : i32
    scf.if %34 {
      %c0_18 = arith.constant 0 : index
      %c0_19 = arith.constant 0 : index
      %35 = vector.load %arg8[%c0_18, %c0_19] : memref<8x1xf32, #tpu.memory_space<vmem>>, vector<8x1xf32>
      %c0_20 = arith.constant 0 : index
      %c0_21 = arith.constant 0 : index
      %36 = vector.load %arg6[%c0_20, %c0_21] : memref<8x8xf32, #tpu.memory_space<vmem>>, vector<8x8xf32>
      %cst_22 = arith.constant dense<0.000000e+00> : vector<8x1xf32>
      %37 = tpu.matmul %36, %35, %cst_22 {dimension_numbers = #tpu.dot_dimension_numbers<[1], [0], [0], [1], [0, 0, 1, 1], [], []>} : vector<8x8xf32>, vector<8x1xf32>, vector<8x1xf32> -> vector<8x1xf32>
      %38 = arith.divf %35, %37 : vector<8x1xf32>
      %39 = vector.shape_cast %38 : vector<8x1xf32> to vector<1x8x1xf32>
      %c0_23 = arith.constant 0 : index
      %c0_24 = arith.constant 0 : index
      %c0_25 = arith.constant 0 : index
      %40 = vector.load %arg7[%c0_23, %c0_24, %c0_25] : memref<1x8x1xf32, #tpu.memory_space<vmem>>, vector<1x8x1xf32>
      tpu.vector_store %arg7[%c0_23, %c0_24, %c0_25], %39 {strides = array<i32>} : memref<1x8x1xf32, #tpu.memory_space<vmem>>, vector<1x8x1xf32>,
    } else {
    }
    return
  }
  func.func @transform_0(%arg0: i32, %arg1: i32) -> (i32, i32, i32) {
    %c0_i32 = arith.constant 0 : i32
    %c0_i32_0 = arith.constant 0 : i32
    return %arg0, %c0_i32, %arg1 : i32, i32, i32
  }
  func.func @transform_1(%arg0: i32, %arg1: i32) -> (i32, i32) {
    %c0_i32 = arith.constant 0 : i32
    %c0_i32_0 = arith.constant 0 : i32
    %c0_i32_1 = arith.constant 0 : i32
    return %c0_i32, %c0_i32_0 : i32, i32
  }
  func.func @transform_2(%arg0: i32, %arg1: i32) -> (i32, i32) {
    %c0_i32 = arith.constant 0 : i32
    %c0_i32_0 = arith.constant 0 : i32
    %c0_i32_1 = arith.constant 0 : i32
    return %c0_i32, %c0_i32_0 : i32, i32
  }
  func.func @transform_3(%arg0: i32, %arg1: i32) -> (i32, i32) {
    %c0_i32 = arith.constant 0 : i32
    %c0_i32_0 = arith.constant 0 : i32
    %c0_i32_1 = arith.constant 0 : i32
    return %c0_i32, %c0_i32_0 : i32, i32
  }
  func.func @transform_4(%arg0: i32, %arg1: i32) -> (i32, i32) {
    %c0_i32 = arith.constant 0 : i32
    %c0_i32_0 = arith.constant 0 : i32
    %c0_i32_1 = arith.constant 0 : i32
    return %c0_i32, %c0_i32_0 : i32, i32
  }
  func.func @transform_5(%arg0: i32, %arg1: i32) -> (i32, i32, i32) {
    %c0_i32 = arith.constant 0 : i32
    %c0_i32_0 = arith.constant 0 : i32
    %c0_i32_1 = arith.constant 0 : i32
    return %arg0, %c0_i32, %c0_i32_0 : i32, i32, i32
  }
}

</mosaic_0001>

<llo_original>
// kernel: tpu_custom_call.1
$region0: #{tpu_custom_call.1}
  #allocation0 [shape = 'u32[]', space=smem, size = 0x4, offset = 0x4, fixed_abs, tag = 'smem constant byte address 0x4 - core index']
  #allocation1 [shape = 'u32[72,128]{1,0:T(1,128)}', space=vmem, size = 0x9000, scoped, tag = 'internal scratch']
  #allocation2 [shape = 'f32[8,1]{1,0:T(8,128)}', space=vmem, size = 0x1000, scoped, tag = 'scratch operand']
  %s0 = inlined_call_operand.vmem [shape: f32[2,36,256], index: 0, kind: input, shape index: {}]
  %s1 = inlined_call_operand.vmem [shape: f32[8,36], index: 1, kind: input, shape index: {}]
  %s2 = inlined_call_operand.vmem [shape: f32[8,1], index: 2, kind: input, shape index: {}]
  %s3 = inlined_call_operand.vmem [shape: f32[8,1], index: 3, kind: input, shape index: {}]
  %s4 = inlined_call_operand.vmem [shape: f32[8,8], index: 4, kind: input, shape index: {}]
  %s5 = inlined_call_operand.vmem [shape: f32[2,8,1], index: 5, kind: output, shape index: {}]
  %s6 = sld [smem:[#allocation0]]
  $region99: #{tpu_custom_call.1} parent=0
    _
  %s8 = ssub.s32 1, %s6
  %s9 = scalar_select 0, %s8, %s6
  $region1: #{tpu_custom_call.1} parent=0
    #allocation3 [shape = 'u8[40960]{0}', space=vmem, size = 0xa000, scoped, tag = 'input window, operand 0']
    loop: start=0, step=1, limit=6
    $region2: #{tpu_custom_call.1} parent=1 // loop_pre_header
      _
    $region3: #{tpu_custom_call.1} parent=1 // loop_header
      %s11 = sphi 0, %s15
      %p12 = scmp.ge.s32.totalorder %s11, 6
      %s18 = sphi 0, %s30
      %s19 = sphi 0, %s26
      %s20 = sphi 0, %s18
      %s21 = sphi 0, %s19
      %s22 = sphi 0, %s20
      %s23 = sphi 0, %s21
      %s35 = sphi 0, %s37
      %s38 = sphi 0, %s35
      %s39 = sphi 0, %s38
      %s55 = sphi 0, %s39
      %s59 = sphi 0, %s59
      %s61 = sphi 0, %s59
      %s62 = sphi 0, %s61
      %s76 = sphi 0, %s62
      %s80 = sphi 0, %s80
      %s82 = sphi 0, %s80
      %s83 = sphi 0, %s82
      %s97 = sphi 0, %s83
      %s101 = sphi 0, %s101
      %s103 = sphi 0, %s101
      %s104 = sphi 0, %s103
      %s118 = sphi 0, %s104
      %s122 = sphi 0, %s122
      %s124 = sphi 0, %s122
      %s125 = sphi 0, %s124
      %s139 = sphi 0, %s125
      %s145 = sphi 0, %s147
      %s148 = sphi 0, %s145
      %s149 = sphi 0, %s148
      %s165 = sphi 0, %s149
    $region4: #{tpu_custom_call.1} parent=1 // loop_header_branch
      %14 = sbr.rel (%p12) target = $region8
    $region5: #{tpu_custom_call.1} parent=1 // loop_body
      %s16 = ssub.s32 %s11, 1
      %s17 = ssub.s32 %s11, 2
      %s24 = sadd.s32 1, %s19
      %p25 = scmp.ge.s32.totalorder %s24, 2
      %s26 = scalar_select %p25, 0, %s24
      %s27 = sadd.s32 1, %s18
      %s28 = scalar_select %p25, %s27, %s18
      %p29 = scmp.ge.s32.totalorder %s28, 2
      %s30 = scalar_select %p29, 0, %s28
      %s31 = ssub.s32 %s18, %s30
      %s32 = ssub.s32 %s19, %s26
      %s33 = sor.u32 %s31, %s32
      %p34 = scmp.eq.s32.totalorder %s33, 0
      %s36 = sadd.s32 %s35, 1
      %s37 = scalar_select %p34, %s35, %s36
      %p40 = pneg %p34
      %p41 = scmp.eq.s32.totalorder %s11, 3
      %p42 = por %p40, %p41
      %p43 = scmp.ne.s32.totalorder %s35, %s38
      %p44 = scmp.eq.s32.totalorder %s11, 0
      %p45 = por %p43, %p44
      %p46 = scmp.ne.s32.totalorder %s35, %s38
      %p47 = scmp.eq.s32.totalorder %s16, 3
      %p48 = por %p46, %p47
      %p49 = scmp.ne.s32.totalorder %s38, %s39
      %p50 = scmp.eq.s32.totalorder %s16, 0
      %p51 = por %p49, %p50
      %p52 = scmp.ne.s32.totalorder %s38, %s39
      %p53 = scmp.eq.s32.totalorder %s17, 3
      %p54 = por %p52, %p53
      %p56 = scmp.ne.s32.totalorder %s39, %s55
      %p57 = scmp.eq.s32.totalorder %s17, 0
      %p58 = por %p56, %p57
      %s60 = sadd.s32 %s59, 1
      %p63 = scmp.eq.s32.totalorder %s11, 3
      %p64 = scmp.ne.s32.totalorder %s59, %s61
      %p65 = scmp.eq.s32.totalorder %s11, 0
      %p66 = por %p64, %p65
      %p67 = scmp.ne.s32.totalorder %s59, %s61
      %p68 = scmp.eq.s32.totalorder %s16, 3
      %p69 = por %p67, %p68
      %p70 = scmp.ne.s32.totalorder %s61, %s62
      %p71 = scmp.eq.s32.totalorder %s16, 0
      %p72 = por %p70, %p71
      %p73 = scmp.ne.s32.totalorder %s61, %s62
      %p74 = scmp.eq.s32.totalorder %s17, 3
      %p75 = por %p73, %p74
      %p77 = scmp.ne.s32.totalorder %s62, %s76
      %p78 = scmp.eq.s32.totalorder %s17, 0
      %p79 = por %p77, %p78
      %s81 = sadd.s32 %s80, 1
      %p84 = scmp.eq.s32.totalorder %s11, 3
      %p85 = scmp.ne.s32.totalorder %s80, %s82
      %p86 = scmp.eq.s32.totalorder %s11, 0
      %p87 = por %p85, %p86
      %p88 = scmp.ne.s32.totalorder %s80, %s82
      %p89 = scmp.eq.s32.totalorder %s16, 3
      %p90 = por %p88, %p89
      %p91 = scmp.ne.s32.totalorder %s82, %s83
      %p92 = scmp.eq.s32.totalorder %s16, 0
      %p93 = por %p91, %p92
      %p94 = scmp.ne.s32.totalorder %s82, %s83
      %p95 = scmp.eq.s32.totalorder %s17, 3
      %p96 = por %p94, %p95
      %p98 = scmp.ne.s32.totalorder %s83, %s97
      %p99 = scmp.eq.s32.totalorder %s17, 0
      %p100 = por %p98, %p99
      %s102 = sadd.s32 %s101, 1
      %p105 = scmp.eq.s32.totalorder %s11, 3
      %p106 = scmp.ne.s32.totalorder %s101, %s103
      %p107 = scmp.eq.s32.totalorder %s11, 0
      %p108 = por %p106, %p107
      %p109 = scmp.ne.s32.totalorder %s101, %s103
      %p110 = scmp.eq.s32.totalorder %s16, 3
      %p111 = por %p109, %p110
      %p112 = scmp.ne.s32.totalorder %s103, %s104
      %p113 = scmp.eq.s32.totalorder %s16, 0
      %p114 = por %p112, %p113
      %p115 = scmp.ne.s32.totalorder %s103, %s104
      %p116 = scmp.eq.s32.totalorder %s17, 3
      %p117 = por %p115, %p116
      %p119 = scmp.ne.s32.totalorder %s104, %s118
      %p120 = scmp.eq.s32.totalorder %s17, 0
      %p121 = por %p119, %p120
      %s123 = sadd.s32 %s122, 1
      %p126 = scmp.eq.s32.totalorder %s11, 3
      %p127 = scmp.ne.s32.totalorder %s122, %s124
      %p128 = scmp.eq.s32.totalorder %s11, 0
      %p129 = por %p127, %p128
      %p130 = scmp.ne.s32.totalorder %s122, %s124
      %p131 = scmp.eq.s32.totalorder %s16, 3
      %p132 = por %p130, %p131
      %p133 = scmp.ne.s32.totalorder %s124, %s125
      %p134 = scmp.eq.s32.totalorder %s16, 0
      %p135 = por %p133, %p134
      %p136 = scmp.ne.s32.totalorder %s124, %s125
      %p137 = scmp.eq.s32.totalorder %s17, 3
      %p138 = por %p136, %p137
      %p140 = scmp.ne.s32.totalorder %s125, %s139
      %p141 = scmp.eq.s32.totalorder %s17, 0
      %p142 = por %p140, %p141
      %s143 = ssub.s32 %s18, %s30
      %p144 = scmp.eq.s32.totalorder %s143, 0
      %s146 = sadd.s32 %s145, 1
      %s147 = scalar_select %p144, %s145, %s146
      %p150 = pneg %p144
      %p151 = scmp.eq.s32.totalorder %s11, 3
      %p152 = por %p150, %p151
      %p153 = scmp.ne.s32.totalorder %s145, %s148
      %p154 = scmp.eq.s32.totalorder %s11, 0
      %p155 = por %p153, %p154
      %p156 = scmp.ne.s32.totalorder %s145, %s148
      %p157 = scmp.eq.s32.totalorder %s16, 3
      %p158 = por %p156, %p157
      %p159 = scmp.ne.s32.totalorder %s148, %s149
      %p160 = scmp.eq.s32.totalorder %s16, 0
      %p161 = por %p159, %p160
      %p162 = scmp.ne.s32.totalorder %s148, %s149
      %p163 = scmp.eq.s32.totalorder %s17, 3
      %p164 = por %p162, %p163
      %p166 = scmp.ne.s32.totalorder %s149, %s165
      %p167 = scmp.eq.s32.totalorder %s17, 0
      %p168 = por %p166, %p167
      %p169 = scmp.le.s32.totalorder 1, %s11
      %p170 = scmp.lt.s32.totalorder %s11, 5
      %p171 = pnand %p169, %p170
      %p172 = pneg %p171
      // Predicated region
      $region9: #{tpu_custom_call.1} parent=5 // pred_check
        _
      $region10: #{tpu_custom_call.1} parent=5 // pred_check_branch
        %174 = sbr.rel (%p171) target = $region12
      $region11: #{tpu_custom_call.1} parent=5 // pred_region
        %s175 = ssub.s32 %s11, 1
        // Predicated region
        $region13: #{tpu_custom_call.1} parent=11 // pred_check
          %p176 = pneg %p72
        $region14: #{tpu_custom_call.1} parent=11 // pred_check_branch
          %178 = sbr.rel (%p176) target = $region16
        $region15: #{tpu_custom_call.1} parent=11 // pred_region
          _
        $region16: #{tpu_custom_call.1} parent=11 // pred_fallthru
          _
        // Predicated region
        $region17: #{tpu_custom_call.1} parent=11 // pred_check
          %p179 = pneg %p93
        $region18: #{tpu_custom_call.1} parent=11 // pred_check_branch
          %181 = sbr.rel (%p179) target = $region20
        $region19: #{tpu_custom_call.1} parent=11 // pred_region
          _
        $region20: #{tpu_custom_call.1} parent=11 // pred_fallthru
          _
        // Predicated region
        $region21: #{tpu_custom_call.1} parent=11 // pred_check
          %p182 = pneg %p114
        $region22: #{tpu_custom_call.1} parent=11 // pred_check_branch
          %184 = sbr.rel (%p182) target = $region24
        $region23: #{tpu_custom_call.1} parent=11 // pred_region
          _
        $region24: #{tpu_custom_call.1} parent=11 // pred_fallthru
          _
        // Predicated region
        $region25: #{tpu_custom_call.1} parent=11 // pred_check
          %p185 = pneg %p135
        $region26: #{tpu_custom_call.1} parent=11 // pred_check_branch
          %187 = sbr.rel (%p185) target = $region28
        $region27: #{tpu_custom_call.1} parent=11 // pred_region
          _
        $region28: #{tpu_custom_call.1} parent=11 // pred_fallthru
          _
      $region12: #{tpu_custom_call.1} parent=5 // pred_fallthru
        _
      %p188 = scmp.lt.s32.totalorder %s11, 4
      // Predicated region
      $region29: #{tpu_custom_call.1} parent=5 // pred_check
        %p189 = pneg %p188
      $region30: #{tpu_custom_call.1} parent=5 // pred_check_branch
        %191 = sbr.rel (%p189) target = $region32
      $region31: #{tpu_custom_call.1} parent=5 // pred_region
        // Predicated region
        $region33: #{tpu_custom_call.1} parent=31 // pred_check
          %p192 = pneg %p45
        $region34: #{tpu_custom_call.1} parent=31 // pred_check_branch
          %194 = sbr.rel (%p192) target = $region36
        $region35: #{tpu_custom_call.1} parent=31 // pred_region
          %s195 = sand.u32 %s35, 1
          %s196 = sand.u32 %s35, 1
          %s197 = smul.addr %s196, 40
          %s198 = scalar_lea.vmem [#allocation3], %s197
          %s199 = smul.addr %s18, 10
          %s200 = sadd.s32 %s19, %s199
          %s201 = smul.addr %s200, 8
          %s202 = scalar_lea.vmem %s0, %s201
          // Predicated region
          $region37: #{tpu_custom_call.1} parent=35 // pred_check
            _
          $region38: #{tpu_custom_call.1} parent=35 // pred_check_branch
            %204 = sbr.rel (0) target = $region40
          $region39: #{tpu_custom_call.1} parent=35 // pred_region
            // Predicated region
            $region41: #{tpu_custom_call.1} parent=39 // pred_check
              _
            $region42: #{tpu_custom_call.1} parent=39 // pred_check_branch
              %206 = sbr.rel (0) target = $region44
            $region43: #{tpu_custom_call.1} parent=39 // pred_region
              // Predicated region
              $region56: #{tpu_custom_call.1} parent=43 // pred_check
                _
              $region57: #{tpu_custom_call.1} parent=43 // pred_check_branch
                %230 = sbr.rel (0) target = $region59
              $region58: #{tpu_custom_call.1} parent=43 // pred_region
                loop: start=0, step=1, limit=1
                $region60: #{tpu_custom_call.1} parent=58 // loop_pre_header
                  _
                $region61: #{tpu_custom_call.1} parent=58 // loop_header
                  %s232 = sphi 0, %s236
                  %p233 = scmp.ge.s32.totalorder %s232, 1
                  %s237 = sphi %s202, %s202
                  %s238 = sphi %s198, %s198
                $region62: #{tpu_custom_call.1} parent=58 // loop_header_branch
                  %235 = sbr.rel (%p233) target = $region66
                $region63: #{tpu_custom_call.1} parent=58 // loop_body
                  %v239 = vld [vmem:[%s237] sm:$0xff]
                  %240 = vst [vmem:[%s238] sm:$0xff] %v239
                  %v241 = vld [vmem:[%s237 + $0x10] sm:$0xff]
                  %242 = vst [vmem:[%s238 + $0x8] sm:$0xff] %v241
                  %v243 = vld [vmem:[%s237 + $0x20] sm:$0xff]
                  %244 = vst [vmem:[%s238 + $0x10] sm:$0xff] %v243
                  %v245 = vld [vmem:[%s237 + $0x30] sm:$0xff]
                  %246 = vst [vmem:[%s238 + $0x18] sm:$0xff] %v245
                  %v247 = vld [vmem:[%s237 + $0x40] sm:$0xff]
                  %248 = vst [vmem:[%s238 + $0x20] sm:$0xff] %v247
                $region64: #{tpu_custom_call.1} parent=58 // loop_footer
                  %s236 = sadd.s32 1, %s232
                $region65: #{tpu_custom_call.1} parent=58 // loop_footer_branch
                  %231 = sbr.rel target = $region61
                $region66: #{tpu_custom_call.1} parent=58 // loop_exit
                  _
              $region59: #{tpu_custom_call.1} parent=43 // pred_fallthru
                _
              // Predicated region
              $region67: #{tpu_custom_call.1} parent=43 // pred_check
                _
              $region68: #{tpu_custom_call.1} parent=43 // pred_check_branch
                %250 = sbr.rel target = $region70
              $region69: #{tpu_custom_call.1} parent=43 // pred_region
                _
              $region70: #{tpu_custom_call.1} parent=43 // pred_fallthru
                _
            $region44: #{tpu_custom_call.1} parent=39 // pred_fallthru
              _
            // Predicated region
            $region45: #{tpu_custom_call.1} parent=39 // pred_check
              _
            $region46: #{tpu_custom_call.1} parent=39 // pred_check_branch
              %208 = sbr.rel target = $region48
            $region47: #{tpu_custom_call.1} parent=39 // pred_region
              %s210 = ssub.s32 256, 1
              loop: start=0, step=1, limit=1
              $region49: #{tpu_custom_call.1} parent=47 // loop_pre_header
                _
              $region50: #{tpu_custom_call.1} parent=47 // loop_header
                %s212 = sphi 0, %s216
                %p213 = scmp.ge.s32.totalorder %s212, 1
                %s217 = sphi %s202, %s202
                %s218 = sphi %s198, %s198
              $region51: #{tpu_custom_call.1} parent=47 // loop_header_branch
                %215 = sbr.rel (%p213) target = $region55
              $region52: #{tpu_custom_call.1} parent=47 // loop_body
                %v219 = vld [vmem:[%s217] sm:%s210]
                %220 = vst [vmem:[%s218] sm:%s210] %v219
                %v221 = vld [vmem:[%s217 + $0x10] sm:%s210]
                %222 = vst [vmem:[%s218 + $0x8] sm:%s210] %v221
                %v223 = vld [vmem:[%s217 + $0x20] sm:%s210]
                %224 = vst [vmem:[%s218 + $0x10] sm:%s210] %v223
                %v225 = vld [vmem:[%s217 + $0x30] sm:%s210]
                %226 = vst [vmem:[%s218 + $0x18] sm:%s210] %v225
                %v227 = vld [vmem:[%s217 + $0x40] sm:%s210]
                %228 = vst [vmem:[%s218 + $0x20] sm:%s210] %v227
              $region53: #{tpu_custom_call.1} parent=47 // loop_footer
                %s216 = sadd.s32 1, %s212
              $region54: #{tpu_custom_call.1} parent=47 // loop_footer_branch
                %211 = sbr.rel target = $region50
              $region55: #{tpu_custom_call.1} parent=47 // loop_exit
                _
            $region48: #{tpu_custom_call.1} parent=39 // pred_fallthru
              _
          $region40: #{tpu_custom_call.1} parent=35 // pred_fallthru
            _
          %251 = vnop
        $region36: #{tpu_custom_call.1} parent=31 // pred_fallthru
          _
      $region32: #{tpu_custom_call.1} parent=5 // pred_fallthru
        _
      %p252 = scmp.le.s32.totalorder 1, %s11
      %p253 = scmp.lt.s32.totalorder %s11, 5
      %p254 = pnand %p252, %p253
      %p255 = pneg %p254
      // Predicated region
      $region71: #{tpu_custom_call.1} parent=5 // pred_check
        _
      $region72: #{tpu_custom_call.1} parent=5 // pred_check_branch
        %257 = sbr.rel (%p254) target = $region74
      $region73: #{tpu_custom_call.1} parent=5 // pred_region
        %s258 = ssub.s32 %s11, 1
        %s259 = sand.u32 %s38, 1
        %s260 = sand.u32 %s38, 1
        %s261 = smul.addr %s260, 40
        %s262 = scalar_lea.vmem [#allocation3], %s261
        // Predicated region
        $region75: #{tpu_custom_call.1} parent=73 // pred_check
          %p263 = pneg %p51
        $region76: #{tpu_custom_call.1} parent=73 // pred_check_branch
          %265 = sbr.rel (%p263) target = $region78
        $region77: #{tpu_custom_call.1} parent=73 // pred_region
          _
        $region78: #{tpu_custom_call.1} parent=73 // pred_fallthru
          _
        %s266 = sand.u32 %s38, 1
        %s267 = sand.u32 %s38, 1
        %s268 = smul.addr %s267, 40
        %s269 = scalar_lea.vmem [#allocation3], %s268
        %p270 = pneg %p51
        %p271 = pneg %p48
        %p272 = pneg %p72
        %p273 = pneg %p69
        %p274 = pneg %p93
        %p275 = pneg %p90
        %p276 = pneg %p114
        %p277 = pneg %p111
        %p278 = pneg %p135
        %p279 = pneg %p132
        %p280 = pneg %p161
        %p281 = pneg %p158
        %p282 = scmp.lt.s32.totalorder %s20, 1
        %s283 = scalar_select %p282, %s20, 1
        %s284 = smul.addr %s283, 8
        %s285 = scalar_lea.vmem %s5, %s284
        %p286 = scmp.lt.s32.totalorder %s20, 1
        %s287 = scalar_select %p286, %s20, 1
        %s288 = smul.addr %s287, 8
        %s289 = scalar_lea.vmem %s5, %s288
        %p290 = scmp.eq.s32.totalorder %s21, 0
        // Predicated region
        $region79: #{tpu_custom_call.1} parent=73 // pred_check
          %p291 = pneg %p290
        $region80: #{tpu_custom_call.1} parent=73 // pred_check_branch
          %293 = sbr.rel (%p291) target = $region82
        $region81: #{tpu_custom_call.1} parent=73 // pred_region
          %vm294 = vcmask 7168
          %295 = vst.msk [vmem:[#allocation2] sm:$0xff] %vm294, 0.0
        $region82: #{tpu_custom_call.1} parent=73 // pred_fallthru
          _
        %v296 = vld [vmem:[%s1] sm:$0xff]
        %v297 = vld [vmem:[%s262] sm:$0xff]
        %v298 = vld [vmem:[%s262 + $0x8] sm:$0xff]
        %v299 = vld [vmem:[%s262 + $0x10] sm:$0xff]
        %v300 = vld [vmem:[%s262 + $0x18] sm:$0xff]
        %v301 = vld [vmem:[%s262 + $0x20] sm:$0xf]
        %vm302 = vcmask 293888
        %v304 = vsel %vm302, %v296, 0
        %vm306 = vcmask 1043456
        %v308 = vsel %vm306, %v301, 0
        %310 = vmatpush.msra.mxu0 0.0
        %311 = vmatpush.msra.mxu0 0.0
        %312 = vmatpush.msra.mxu0 0.0
        %313 = vmatpush.msra.mxu0 0.0
        %314 = vmatpush.msra.mxu0 0.0
        %315 = vmatpush.msra.mxu0 0.0
        %316 = vmatpush.msra.mxu0 0.0
        %317 = vmatpush.msra.mxu0 0.0
        %318 = vmatpush.msra.mxu0 0.0
        %319 = vmatpush.msra.mxu0 0.0
        %320 = vmatpush.msra.mxu0 0.0
        %321 = vmatpush.msra.mxu0 %v308
        %322 = vmatpush.msra.mxu0 %v300
        %323 = vmatpush.msra.mxu0 %v299
        %324 = vmatpush.msra.mxu0 %v298
        %325 = vmatpush.msra.mxu0 %v297
        %326 = vmatmul.f32.gmra.mxu0 %v304
        %v327 = vpop.f32.mrf.mxu0
        %v328 = vadd.f32 0.0, %v327
        %329 = vdwg.mxu0
        %v330 = vmax.f32 %v328, 0.0
        %v331 = vld [vmem:[%s2] sm:$0xff]
        %333 = vset.pattern.permute.xlu0 0
        %334 = vperm.xlu0 %333, %v331
        %v335 = vpop.permute.xlu0 %334
        %v337 = vsub.f32 %v330, %v335
        %v338 = vmul.f32 %v337, %v337
        %v339 = vsub.f32 0.0, %v338
        %v340 = vld [vmem:[%s3] sm:$0xff]
        %342 = vset.pattern.permute.xlu0 0
        %343 = vperm.xlu0 %342, %v340
        %v344 = vpop.permute.xlu0 %343
        %v346 = vmul.f32 %v339, %v344
        %v347 = vmul.f32 %v346, 1.442695
        %v348 = vpow.pop %v347
        %s349 = smul.u32 %s21, 128
        %v350 = vlaneseq
        %v351 = vand.u32 %v350, 127
        %v352 = vstv %s349
        %v353 = vadd.s32 %v352, %v351
        %vm354 = vcmp.lt.s32.totalorder %v353, 196
        %v355 = vsel %vm354, %v348, 0.0
        %v356 = vld [vmem:[#allocation2] sm:$0xff]
        %357 = vadd.xlane.f32.xlu0 %v355
        %v358 = vpop.xlane.xlu0 %357
        %v359 = vadd.f32 %v356, %v358
        %vm360 = vcmask 7168
        %361 = vst.msk [vmem:[#allocation2] sm:$0xff] %vm360, %v359
        %p362 = scmp.eq.s32.totalorder %s21, 1
        // Predicated region
        $region83: #{tpu_custom_call.1} parent=73 // pred_check
          %p363 = pneg %p362
        $region84: #{tpu_custom_call.1} parent=73 // pred_check_branch
          %365 = sbr.rel (%p363) target = $region86
        $region85: #{tpu_custom_call.1} parent=73 // pred_region
          %v366 = vld [vmem:[#allocation2] sm:$0xff]
          %v367 = vld [vmem:[%s4] sm:$0xff]
          %vm368 = vcmask 64512
          %v370 = vsel %vm368, %v367, 0
          %372 = vmatpush.msra.mxu0 0.0
          %373 = vmatpush.msra.mxu0 0.0
          %374 = vmatpush.msra.mxu0 0.0
          %375 = vmatpush.msra.mxu0 0.0
          %376 = vmatpush.msra.mxu0 0.0
          %377 = vmatpush.msra.mxu0 0.0
          %378 = vmatpush.msra.mxu0 0.0
          %379 = vmatpush.msra.mxu0 0.0
          %380 = vmatpush.msra.mxu0 0.0
          %381 = vmatpush.msra.mxu0 0.0
          %382 = vmatpush.msra.mxu0 0.0
          %383 = vmatpush.msra.mxu0 0.0
          %384 = vmatpush.msra.mxu0 0.0
          %385 = vmatpush.msra.mxu0 0.0
          %386 = vmatpush.msra.mxu0 0.0
          %387 = vmatpush.msra.mxu0 %v366
          %388 = vmatmul.f32.gmra.mxu0 %v370
          %v389 = vpop.f32.mrf.mxu0
          %v390 = vadd.f32 0.0, %v389
          %391 = vdwg.mxu0
          %v392 = vrcp.pop %v390
          %v393 = vmul.f32 %v390, %v392
          %v394 = vsub.f32 1.0, %v393
          %v395 = vmul.f32 %v392, %v394
          %v396 = vadd.f32 %v392, %v395
          %vm397 = vweird.f32 %v390
          %vm398 = vweird.f32 %v392
          %vm399 = vmor %vm397, %vm398
          %v400 = vsel %vm399, %v392, %v396
          %v401 = vand.u32 2147483647, %v390
          %vm402 = vcmp.eq.f32.partialorder %v401, 8.507059e+37
          %v403 = vand.u32 %v390, 2147483648
          %v404 = vor.u32 1.1754944e-38, %v403
          %v405 = vsel %vm402, %v404, %v400
          %v406 = vmul.f32 %v366, %v405
          %407 = vst.msk [vmem:[%s289] sm:$0xff] %vm360, %v406
        $region86: #{tpu_custom_call.1} parent=73 // pred_fallthru
          _
        %p408 = scmp.lt.s32.totalorder %s20, 1
        %s409 = scalar_select %p408, %s20, 1
        %s410 = smul.addr %s409, 8
        %s411 = scalar_lea.vmem %s5, %s410
        // Predicated region
        $region87: #{tpu_custom_call.1} parent=73 // pred_check
          %p412 = pneg %p158
        $region88: #{tpu_custom_call.1} parent=73 // pred_check_branch
          %414 = sbr.rel (%p412) target = $region90
        $region89: #{tpu_custom_call.1} parent=73 // pred_region
          _
        $region90: #{tpu_custom_call.1} parent=73 // pred_fallthru
          _
      $region74: #{tpu_custom_call.1} parent=5 // pred_fallthru
        _
      %p415 = scmp.le.s32.totalorder 2, %s11
      // Predicated region
      $region91: #{tpu_custom_call.1} parent=5 // pred_check
        %p416 = pneg %p415
      $region92: #{tpu_custom_call.1} parent=5 // pred_check_branch
        %418 = sbr.rel (%p416) target = $region94
      $region93: #{tpu_custom_call.1} parent=5 // pred_region
        %s419 = ssub.s32 %s11, 2
        // Predicated region
        $region95: #{tpu_custom_call.1} parent=93 // pred_check
          %p420 = pneg %p164
        $region96: #{tpu_custom_call.1} parent=93 // pred_check_branch
          %422 = sbr.rel (%p420) target = $region98
        $region97: #{tpu_custom_call.1} parent=93 // pred_region
          %p423 = scmp.lt.s32.totalorder %s22, 1
          %s424 = scalar_select %p423, %s22, 1
          %s425 = smul.addr %s424, 8
          %s426 = scalar_lea.vmem %s5, %s425
        $region98: #{tpu_custom_call.1} parent=93 // pred_fallthru
          _
      $region94: #{tpu_custom_call.1} parent=5 // pred_fallthru
        _
    $region6: #{tpu_custom_call.1} parent=1 // loop_footer
      %s15 = sadd.s32 1, %s11
    $region7: #{tpu_custom_call.1} parent=1 // loop_footer_branch
      %10 = sbr.rel target = $region3
    $region8: #{tpu_custom_call.1} parent=1 // loop_exit
      _

</llo_original>
